<compile_context>
chip_gen: v7x
topology: tpu7x:2x2x1
jax: 0.10.0
libtpu: 0.0.40
codegen_flags: <defaults>
</compile_context>

<pallas_src>
import functools

import jax
import jax.numpy as jnp
from jax.experimental import pallas as pl
from jax.experimental.pallas import tpu as pltpu


def _tower_kernel(x_ref, w1_ref, b1_ref, w2_ref, b2_ref, o_ref):
    # fc1: [TB, I] @ [I, H] + [1, H], f32 accumulation on the MXU.
    h = jnp.dot(x_ref[...], w1_ref[...], preferred_element_type=jnp.float32)
    h = jnp.maximum(h + b1_ref[...].astype(jnp.float32), 0.0)  # bias + ReLU (f32)
    # Dropout(p=0.4): identity in eval/inference mode.
    # TODO(synk): training-mode dropout would use pltpu.prng_seed +
    # pltpu.prng_random_bits to build a Bernoulli keep-mask and scale by
    # 1/(1-p); eval-mode forward is dropout-free.
    # fc2: [TB, H] @ [H, O] + [1, O]
    out = jnp.dot(h.astype(w2_ref.dtype), w2_ref[...],
                  preferred_element_type=jnp.float32)
    out = out + b2_ref[...].astype(jnp.float32)
    # Sigmoid in f32 (EUP), then cast to the output dtype.
    o_ref[...] = jax.nn.sigmoid(out).astype(o_ref.dtype)


def _round_up(n, m):
    return ((n + m - 1) // m) * m


@functools.partial(jax.jit, static_argnames=("block_batch",))
def tower_forward(x, w1_t, b1, w2_t, b2, *, block_batch=None):
    """x: [..., I]; w1_t: [I, H]; b1: [1, H]; w2_t: [H, O]; b2: [1, O]."""
    I, H = w1_t.shape
    H2, O = w2_t.shape
    assert H == H2 and x.shape[-1] == I

    # nn.Linear semantics: operate on the last dim, arbitrary leading dims.
    lead_shape = x.shape[:-1]
    x2d = x.reshape((-1, I))
    B = x2d.shape[0]

    # Batch tile: big enough to amortize per-step overhead, multiple of 8
    # (sublanes), clamped to the 8-padded batch so small batches stay one step.
    if block_batch is None:
        block_batch = min(1024, _round_up(max(B, 1), 8))
    block_batch = max(8, _round_up(block_batch, 8))

    # Pad batch to a multiple of the tile so every block is full. Padded rows
    # compute garbage that is sliced off; there is no cross-row reduction.
    Bp = _round_up(B, block_batch)
    if Bp != B:
        x2d = jnp.pad(x2d, ((0, Bp - B), (0, 0)))

    grid = (Bp // block_batch,)

    out = pl.pallas_call(
        _tower_kernel,
        out_shape=jax.ShapeDtypeStruct((Bp, O), x.dtype),
        grid_spec=pltpu.PrefetchScalarGridSpec(
            num_scalar_prefetch=0,
            grid=grid,
            in_specs=[
                # x: streamed / double-buffered over the batch axis.
                pl.BlockSpec((block_batch, I), lambda i: (i, 0)),
                # weights & biases: constant index map -> VMEM-resident.
                pl.BlockSpec((I, H), lambda i: (0, 0)),
                pl.BlockSpec((1, H), lambda i: (0, 0)),
                pl.BlockSpec((H, O), lambda i: (0, 0)),
                pl.BlockSpec((1, O), lambda i: (0, 0)),
            ],
            out_specs=pl.BlockSpec((block_batch, O), lambda i: (i, 0)),
        ),
        compiler_params=pltpu.CompilerParams(
            # Batch tiles are independent -> parallel (megacore on v7x).
            dimension_semantics=("parallel",)),
    )(x2d, w1_t, b1, w2_t, b2)

    if Bp != B:
        out = out[:B]
    return out.reshape(lead_shape + (O,))


def init_tower_params(key, input_size, output_size, hidden_size,
                      dtype=jnp.float32):
    """Deterministic init mirroring nn.Linear defaults (U(-1/sqrt(fan_in), .))."""
    k1, k2, k3, k4 = jax.random.split(key, 4)
    bound1 = 1.0 / (input_size ** 0.5)
    bound2 = 1.0 / (hidden_size ** 0.5)
    # PyTorch stores W as [out, in]; we keep the transposed [in, out] layout.
    w1_t = jax.random.uniform(k1, (input_size, hidden_size), dtype,
                              minval=-bound1, maxval=bound1)
    b1 = jax.random.uniform(k2, (1, hidden_size), dtype,
                            minval=-bound1, maxval=bound1)
    w2_t = jax.random.uniform(k3, (hidden_size, output_size), dtype,
                              minval=-bound2, maxval=bound2)
    b2 = jax.random.uniform(k4, (1, output_size), dtype,
                            minval=-bound2, maxval=bound2)
    return w1_t, b1, w2_t, b2


def _ref_forward(x, w1_t, b1, w2_t, b2):
    # Pure-JAX reference (eval mode: dropout is identity).
    return jax.nn.sigmoid(jnp.maximum(x @ w1_t + b1, 0.0) @ w2_t + b2)


if __name__ == "__main__":
    # Small shapes consistent with the module's forward: x is [batch, input_size].
    batch, input_size, hidden_size, output_size = 8, 32, 64, 4

    key = jax.random.PRNGKey(0)
    kx, kp = jax.random.split(key)
    x = jax.random.normal(kx, (batch, input_size), jnp.float32)
    w1_t, b1, w2_t, b2 = init_tower_params(kp, input_size, output_size,
                                           hidden_size)

    # 1) Small-batch path (single grid step).
    out = tower_forward(x, w1_t, b1, w2_t, b2)
    out = jax.block_until_ready(out)
    ref = _ref_forward(x, w1_t, b1, w2_t, b2)
    assert out.shape == (batch, output_size)
    assert jnp.allclose(out, ref, atol=1e-5, rtol=1e-5), "mismatch vs reference"

    # 2) Tiled path: non-multiple batch with an explicit small tile to exercise
    #    multi-step pipelining + padding/slicing.
    batch2 = 520
    x2 = jax.random.normal(jax.random.PRNGKey(1), (batch2, input_size),
                           jnp.float32)
    out2 = tower_forward(x2, w1_t, b1, w2_t, b2, block_batch=128)
    out2 = jax.block_until_ready(out2)
    ref2 = _ref_forward(x2, w1_t, b1, w2_t, b2)
    assert out2.shape == (batch2, output_size)
    assert jnp.allclose(out2, ref2, atol=1e-5, rtol=1e-5), "tiled mismatch"

    # 3) nn.Linear-style leading dims: [2, 5, I] -> [2, 5, O].
    x3 = jax.random.normal(jax.random.PRNGKey(2), (2, 5, input_size),
                           jnp.float32)
    out3 = jax.block_until_ready(tower_forward(x3, w1_t, b1, w2_t, b2))
    ref3 = _ref_forward(x3.reshape(-1, input_size), w1_t, b1, w2_t, b2)
    assert out3.shape == (2, 5, output_size)
    assert jnp.allclose(out3.reshape(-1, output_size), ref3,
                        atol=1e-5, rtol=1e-5), "leading-dim mismatch"

    print("KERNEL_OK")
</pallas_src>

<mosaic_0001>
module attributes {stable_mosaic.version = 11 : i64} {
  func.func @_tower_kernel(%arg0: i32, %arg1: memref<8x32xf32, #tpu.memory_space<vmem>>, %arg2: memref<32x64xf32, #tpu.memory_space<vmem>>, %arg3: memref<1x64xf32, #tpu.memory_space<vmem>>, %arg4: memref<64x4xf32, #tpu.memory_space<vmem>>, %arg5: memref<1x4xf32, #tpu.memory_space<vmem>>, %arg6: memref<8x4xf32, #tpu.memory_space<vmem>>) attributes {dimension_semantics = [#tpu.dimension_semantics<parallel>], iteration_bounds = array<i64: 1>, scalar_prefetch = 0 : i64, scratch_operands = 0 : i64, tpu.core_type = #tpu.core_type<tc>, window_params = [{transform_indices = @transform_0, window_bounds = array<i64: 8, 32>}, {pipeline_mode = #tpu.pipeline_mode<synchronous>, transform_indices = @transform_1, window_bounds = array<i64: 32, 64>}, {pipeline_mode = #tpu.pipeline_mode<synchronous>, transform_indices = @transform_2, window_bounds = array<i64: 1, 64>}, {pipeline_mode = #tpu.pipeline_mode<synchronous>, transform_indices = @transform_3, window_bounds = array<i64: 64, 4>}, {pipeline_mode = #tpu.pipeline_mode<synchronous>, transform_indices = @transform_4, window_bounds = array<i64: 1, 4>}, {transform_indices = @transform_5, window_bounds = array<i64: 8, 4>}]} {
    %c0 = arith.constant 0 : index
    %c0_0 = arith.constant 0 : index
    %0 = vector.load %arg1[%c0, %c0_0] : memref<8x32xf32, #tpu.memory_space<vmem>>, vector<8x32xf32>
    %c0_1 = arith.constant 0 : index
    %c0_2 = arith.constant 0 : index
    %1 = vector.load %arg2[%c0_1, %c0_2] : memref<32x64xf32, #tpu.memory_space<vmem>>, vector<32x64xf32>
    %cst = arith.constant dense<0.000000e+00> : vector<8x64xf32>
    %2 = tpu.matmul %0, %1, %cst {dimension_numbers = #tpu.dot_dimension_numbers<[1], [0], [0], [1], [0, 0, 1, 1], [], []>} : vector<8x32xf32>, vector<32x64xf32>, vector<8x64xf32> -> vector<8x64xf32>
    %c0_3 = arith.constant 0 : index
    %c0_4 = arith.constant 0 : index
    %3 = vector.load %arg3[%c0_3, %c0_4] : memref<1x64xf32, #tpu.memory_space<vmem>>, vector<1x64xf32>
    %4 = vector.broadcast %3 : vector<1x64xf32> to vector<8x64xf32>
    %5 = arith.addf %2, %4 : vector<8x64xf32>
    %cst_5 = arith.constant 0.000000e+00 : f32
    %6 = vector.broadcast %cst_5 : f32 to vector<8x64xf32>
    %7 = arith.maximumf %5, %6 : vector<8x64xf32>
    %c0_6 = arith.constant 0 : index
    %c0_7 = arith.constant 0 : index
    %8 = vector.load %arg4[%c0_6, %c0_7] : memref<64x4xf32, #tpu.memory_space<vmem>>, vector<64x4xf32>
    %cst_8 = arith.constant dense<0.000000e+00> : vector<8x4xf32>
    %9 = tpu.matmul %7, %8, %cst_8 {dimension_numbers = #tpu.dot_dimension_numbers<[1], [0], [0], [1], [0, 0, 1, 1], [], []>} : vector<8x64xf32>, vector<64x4xf32>, vector<8x4xf32> -> vector<8x4xf32>
    %c0_9 = arith.constant 0 : index
    %c0_10 = arith.constant 0 : index
    %10 = vector.load %arg5[%c0_9, %c0_10] : memref<1x4xf32, #tpu.memory_space<vmem>>, vector<1x4xf32>
    %11 = vector.broadcast %10 : vector<1x4xf32> to vector<8x4xf32>
    %12 = arith.addf %9, %11 : vector<8x4xf32>
    %13 = arith.negf %12 : vector<8x4xf32>
    %14 = math.exp %13 : vector<8x4xf32>
    %cst_11 = arith.constant 1.000000e+00 : f32
    %15 = vector.broadcast %cst_11 : f32 to vector<8x4xf32>
    %16 = arith.addf %15, %14 : vector<8x4xf32>
    %17 = arith.divf %15, %16 : vector<8x4xf32>
    %c0_12 = arith.constant 0 : index
    %c0_13 = arith.constant 0 : index
    %18 = vector.load %arg6[%c0_12, %c0_13] : memref<8x4xf32, #tpu.memory_space<vmem>>, vector<8x4xf32>
    tpu.vector_store %arg6[%c0_12, %c0_13], %17 {strides = array<i32>} : memref<8x4xf32, #tpu.memory_space<vmem>>, vector<8x4xf32>,
    return
  }
  func.func @transform_0(%arg0: i32) -> (i32, i32) {
    %c0_i32 = arith.constant 0 : i32
    %c0_i32_0 = arith.constant 0 : i32
    return %arg0, %c0_i32 : i32, i32
  }
  func.func @transform_1(%arg0: i32) -> (i32, i32) {
    %c0_i32 = arith.constant 0 : i32
    %c0_i32_0 = arith.constant 0 : i32
    %c0_i32_1 = arith.constant 0 : i32
    return %c0_i32, %c0_i32_0 : i32, i32
  }
  func.func @transform_2(%arg0: i32) -> (i32, i32) {
    %c0_i32 = arith.constant 0 : i32
    %c0_i32_0 = arith.constant 0 : i32
    %c0_i32_1 = arith.constant 0 : i32
    return %c0_i32, %c0_i32_0 : i32, i32
  }
  func.func @transform_3(%arg0: i32) -> (i32, i32) {
    %c0_i32 = arith.constant 0 : i32
    %c0_i32_0 = arith.constant 0 : i32
    %c0_i32_1 = arith.constant 0 : i32
    return %c0_i32, %c0_i32_0 : i32, i32
  }
  func.func @transform_4(%arg0: i32) -> (i32, i32) {
    %c0_i32 = arith.constant 0 : i32
    %c0_i32_0 = arith.constant 0 : i32
    %c0_i32_1 = arith.constant 0 : i32
    return %c0_i32, %c0_i32_0 : i32, i32
  }
  func.func @transform_5(%arg0: i32) -> (i32, i32) {
    %c0_i32 = arith.constant 0 : i32
    %c0_i32_0 = arith.constant 0 : i32
    return %arg0, %c0_i32 : i32, i32
  }
}

</mosaic_0001>

<llo_original>
// kernel: tower_forward.1
$region0: #{tower_forward.1}
  #allocation0 [shape = 'u32[]', space=smem, size = 0x4, offset = 0x4, fixed_abs, tag = 'smem constant byte address 0x4 - core index']
  #allocation1 [shape = 'u32[144,128]{1,0:T(1,128)}', space=vmem, size = 0x12000, scoped, tag = 'internal scratch']
  %s0 = inlined_call_operand.vmem [shape: f32[8,32], index: 0, kind: input, shape index: {}]
  %s1 = inlined_call_operand.vmem [shape: f32[32,64], index: 1, kind: input, shape index: {}]
  %s2 = inlined_call_operand.vmem [shape: f32[1,64], index: 2, kind: input, shape index: {}]
  %s3 = inlined_call_operand.vmem [shape: f32[64,4], index: 3, kind: input, shape index: {}]
  %s4 = inlined_call_operand.vmem [shape: f32[1,4], index: 4, kind: input, shape index: {}]
  %s5 = inlined_call_operand.vmem [shape: f32[8,4], index: 5, kind: output, shape index: {}]
  %s6 = sld [smem:[#allocation0]]
  $region30: #{tower_forward.1} parent=0
    _
  %s8 = ssub.s32 1, %s6
  %s9 = scalar_select 0, %s8, %s6
  // Predicated region
  $region2: #{tower_forward.1} parent=0 // pred_check
    _
  $region3: #{tower_forward.1} parent=0 // pred_check_branch
    %11 = sbr.rel (0) target = $region5
  $region4: #{tower_forward.1} parent=0 // pred_region
    _
  $region5: #{tower_forward.1} parent=0 // pred_fallthru
    _
  // Predicated region
  $region6: #{tower_forward.1} parent=0 // pred_check
    _
  $region7: #{tower_forward.1} parent=0 // pred_check_branch
    %13 = sbr.rel (0) target = $region9
  $region8: #{tower_forward.1} parent=0 // pred_region
    _
  $region9: #{tower_forward.1} parent=0 // pred_fallthru
    _
  // Predicated region
  $region10: #{tower_forward.1} parent=0 // pred_check
    _
  $region11: #{tower_forward.1} parent=0 // pred_check_branch
    %15 = sbr.rel (0) target = $region13
  $region12: #{tower_forward.1} parent=0 // pred_region
    _
  $region13: #{tower_forward.1} parent=0 // pred_fallthru
    _
  // Predicated region
  $region14: #{tower_forward.1} parent=0 // pred_check
    _
  $region15: #{tower_forward.1} parent=0 // pred_check_branch
    %17 = sbr.rel (0) target = $region17
  $region16: #{tower_forward.1} parent=0 // pred_region
    _
  $region17: #{tower_forward.1} parent=0 // pred_fallthru
    _
  // Predicated region
  $region18: #{tower_forward.1} parent=0 // pred_check
    _
  $region19: #{tower_forward.1} parent=0 // pred_check_branch
    %19 = sbr.rel (0) target = $region21
  $region20: #{tower_forward.1} parent=0 // pred_region
    _
  $region21: #{tower_forward.1} parent=0 // pred_fallthru
    _
  %v20 = vld [vmem:[%s0] sm:$0xff]
  %v21 = vld [vmem:[%s1] sm:$0xff]
  %v22 = vld [vmem:[%s1 + $0x8] sm:$0xff]
  %v23 = vld [vmem:[%s1 + $0x10] sm:$0xff]
  %v24 = vld [vmem:[%s1 + $0x18] sm:$0xff]
  %v25 = vld [vmem:[%s2] sm:$0x1]
  %v27 = vlaneseq
  %v28 = vshrl.u32 %v27, 7
  %v29 = vsub.s32 0, %v28
  %v30 = vrot.slane %v25, %v29
  %vm32 = vcmask 261120
  %v34 = vsel %vm32, %v20, 0
  %36 = vmatprep.subr.mxu0 0.0
  %37 = vmatpush1.msra.mxu0 %v21
  %38 = vmatprep.subr.mxu0 0.0
  %39 = vmatpush1.msra.mxu0 %v22
  %40 = vmatprep.subr.mxu0 0.0
  %41 = vmatpush1.msra.mxu0 %v23
  %42 = vmatprep.subr.mxu0 0.0
  %43 = vmatpush1.msra.mxu0 %v24
  %44 = vmatprep.subr.mxu0 0.0
  %45 = vmatpush1.msra.mxu0 0.0
  %46 = vmatprep.subr.mxu0 0.0
  %47 = vmatpush1.msra.mxu0 0.0
  %48 = vmatprep.subr.mxu0 0.0
  %49 = vmatpush1.msra.mxu0 0.0
  %50 = vmatprep.subr.mxu0 0.0
  %51 = vmatpush1.msra.mxu0 0.0
  %52 = vmatprep.subr.mxu0 0.0
  %53 = vmatpush1.msra.mxu0 0.0
  %54 = vmatprep.subr.mxu0 0.0
  %55 = vmatpush1.msra.mxu0 0.0
  %56 = vmatprep.subr.mxu0 0.0
  %57 = vmatpush1.msra.mxu0 0.0
  %58 = vmatprep.subr.mxu0 0.0
  %59 = vmatpush1.msra.mxu0 0.0
  %60 = vmatprep.subr.mxu0 0.0
  %61 = vmatpush1.msra.mxu0 0.0
  %62 = vmatprep.subr.mxu0 0.0
  %63 = vmatpush1.msra.mxu0 0.0
  %64 = vmatprep.subr.mxu0 0.0
  %65 = vmatpush1.msra.mxu0 0.0
  %66 = vmatprep.subr.mxu0 0.0
  %67 = vmatpush1.msra.mxu0 0.0
  %68 = vmatprep.subr.mxu0 0.0
  %69 = vmatpush1.msra.mxu0 0.0
  %70 = vmatprep.subr.mxu0 0.0
  %71 = vmatpush1.msra.mxu0 0.0
  %72 = vmatprep.subr.mxu0 0.0
  %73 = vmatpush1.msra.mxu0 0.0
  %74 = vmatprep.subr.mxu0 0.0
  %75 = vmatpush1.msra.mxu0 0.0
  %76 = vmatprep.subr.mxu0 0.0
  %77 = vmatpush1.msra.mxu0 0.0
  %78 = vmatprep.subr.mxu0 0.0
  %79 = vmatpush1.msra.mxu0 0.0
  %80 = vmatprep.subr.mxu0 0.0
  %81 = vmatpush1.msra.mxu0 0.0
  %82 = vmatprep.subr.mxu0 0.0
  %83 = vmatpush1.msra.mxu0 0.0
  %84 = vmatprep.subr.mxu0 0.0
  %85 = vmatpush1.msra.mxu0 0.0
  %86 = vmatprep.subr.mxu0 0.0
  %87 = vmatpush1.msra.mxu0 0.0
  %88 = vmatprep.subr.mxu0 0.0
  %89 = vmatpush1.msra.mxu0 0.0
  %90 = vmatprep.subr.mxu0 0.0
  %91 = vmatpush1.msra.mxu0 0.0
  %92 = vmatprep.subr.mxu0 0.0
  %93 = vmatpush1.msra.mxu0 0.0
  %94 = vmatprep.subr.mxu0 0.0
  %95 = vmatpush1.msra.mxu0 0.0
  %96 = vmatprep.subr.mxu0 0.0
  %97 = vmatpush1.msra.mxu0 0.0
  %98 = vmatprep.subr.mxu0 0.0
  %99 = vmatpush1.msra.mxu0 0.0
  %100 = vmatprep.mubr.f32.mxu0 0.0
  %101 = vmatmul.mubr.f32.gmra.mrb[0].mxu0 %v34
  %v102 = vpop.f32.mrb[0].mxu0
  %v103 = vadd.f32 %v30, %v102
  %v104 = vpop.f32.mrb[0].mxu0
  %105 = vdwg.mxu0
  %v106 = vmax.f32 %v103, 0.0
  %v107 = vld [vmem:[%s3] sm:$0xff]
  %v108 = vld [vmem:[%s3 + $0x8] sm:$0xff]
  %v109 = vld [vmem:[%s3 + $0x10] sm:$0xff]
  %v110 = vld [vmem:[%s3 + $0x18] sm:$0xff]
  %v111 = vld [vmem:[%s3 + $0x20] sm:$0xff]
  %v112 = vld [vmem:[%s3 + $0x28] sm:$0xff]
  %v113 = vld [vmem:[%s3 + $0x30] sm:$0xff]
  %v114 = vld [vmem:[%s3 + $0x38] sm:$0xff]
  %v115 = vld [vmem:[%s4] sm:$0x1]
  %v117 = vlaneseq
  %v118 = vshrl.u32 %v117, 7
  %v119 = vsub.s32 0, %v118
  %v120 = vrot.slane %v115, %v119
  %vm122 = vcmask 523264
  %v124 = vsel %vm122, %v106, 0
  %126 = vmatprep.subr.mxu0 0.0
  %127 = vmatpush1.msra.mxu0 %v107
  %128 = vmatprep.subr.mxu0 0.0
  %129 = vmatpush1.msra.mxu0 %v108
  %130 = vmatprep.subr.mxu0 0.0
  %131 = vmatpush1.msra.mxu0 %v109
  %132 = vmatprep.subr.mxu0 0.0
  %133 = vmatpush1.msra.mxu0 %v110
  %134 = vmatprep.subr.mxu0 0.0
  %135 = vmatpush1.msra.mxu0 %v111
  %136 = vmatprep.subr.mxu0 0.0
  %137 = vmatpush1.msra.mxu0 %v112
  %138 = vmatprep.subr.mxu0 0.0
  %139 = vmatpush1.msra.mxu0 %v113
  %140 = vmatprep.subr.mxu0 0.0
  %141 = vmatpush1.msra.mxu0 %v114
  %142 = vmatprep.subr.mxu0 0.0
  %143 = vmatpush1.msra.mxu0 0.0
  %144 = vmatprep.subr.mxu0 0.0
  %145 = vmatpush1.msra.mxu0 0.0
  %146 = vmatprep.subr.mxu0 0.0
  %147 = vmatpush1.msra.mxu0 0.0
  %148 = vmatprep.subr.mxu0 0.0
  %149 = vmatpush1.msra.mxu0 0.0
  %150 = vmatprep.subr.mxu0 0.0
  %151 = vmatpush1.msra.mxu0 0.0
  %152 = vmatprep.subr.mxu0 0.0
  %153 = vmatpush1.msra.mxu0 0.0
  %154 = vmatprep.subr.mxu0 0.0
  %155 = vmatpush1.msra.mxu0 0.0
  %156 = vmatprep.subr.mxu0 0.0
  %157 = vmatpush1.msra.mxu0 0.0
  %158 = vmatprep.subr.mxu0 0.0
  %159 = vmatpush1.msra.mxu0 0.0
  %160 = vmatprep.subr.mxu0 0.0
  %161 = vmatpush1.msra.mxu0 0.0
  %162 = vmatprep.subr.mxu0 0.0
  %163 = vmatpush1.msra.mxu0 0.0
  %164 = vmatprep.subr.mxu0 0.0
  %165 = vmatpush1.msra.mxu0 0.0
  %166 = vmatprep.subr.mxu0 0.0
  %167 = vmatpush1.msra.mxu0 0.0
  %168 = vmatprep.subr.mxu0 0.0
  %169 = vmatpush1.msra.mxu0 0.0
  %170 = vmatprep.subr.mxu0 0.0
  %171 = vmatpush1.msra.mxu0 0.0
  %172 = vmatprep.subr.mxu0 0.0
  %173 = vmatpush1.msra.mxu0 0.0
  %174 = vmatprep.subr.mxu0 0.0
  %175 = vmatpush1.msra.mxu0 0.0
  %176 = vmatprep.subr.mxu0 0.0
  %177 = vmatpush1.msra.mxu0 0.0
  %178 = vmatprep.subr.mxu0 0.0
  %179 = vmatpush1.msra.mxu0 0.0
  %180 = vmatprep.subr.mxu0 0.0
  %181 = vmatpush1.msra.mxu0 0.0
  %182 = vmatprep.subr.mxu0 0.0
  %183 = vmatpush1.msra.mxu0 0.0
  %184 = vmatprep.subr.mxu0 0.0
  %185 = vmatpush1.msra.mxu0 0.0
  %186 = vmatprep.subr.mxu0 0.0
  %187 = vmatpush1.msra.mxu0 0.0
  %188 = vmatprep.subr.mxu0 0.0
  %189 = vmatpush1.msra.mxu0 0.0
  %190 = vmatprep.mubr.f32.mxu0 0.0
  %191 = vmatmul.mubr.f32.gmra.mrb[0].mxu0 %v124
  %v192 = vpop.f32.mrb[0].mxu0
  %v193 = vadd.f32 %v120, %v192
  %v194 = vpop.f32.mrb[0].mxu0
  %195 = vdwg.mxu0
  %v196 = vxor.u32 %v193, 2147483648
  %v197 = vmul.f32 %v196, 1.442695
  %v198 = vpow.pop %v197
  %v199 = vadd.f32 %v198, 1.0
  %v200 = vrcp.pop %v199
  %v201 = vmul.f32 1.0, %v200
  %vm202 = vcmask 31744
  %203 = vst.msk [vmem:[%s5] sm:$0xff] %vm202, %v201
  // Predicated region
  $region22: #{tower_forward.1} parent=0 // pred_check
    _
  $region23: #{tower_forward.1} parent=0 // pred_check_branch
    %205 = sbr.rel (0) target = $region25
  $region24: #{tower_forward.1} parent=0 // pred_region
    _
  $region25: #{tower_forward.1} parent=0 // pred_fallthru
    _
  // Predicated region
  $region26: #{tower_forward.1} parent=0 // pred_check
    _
  $region27: #{tower_forward.1} parent=0 // pred_check_branch
    %207 = sbr.rel (0) target = $region29
  $region28: #{tower_forward.1} parent=0 // pred_region
    _
  $region29: #{tower_forward.1} parent=0 // pred_fallthru
    _

</llo_original>
